<compile_context>
chip_gen: v7x
topology: tpu7x:2x2x1
jax: 0.10.0
libtpu: 0.0.40
codegen_flags: <defaults>
</compile_context>

<pallas_src>
import jax
import jax.numpy as jnp
from jax.experimental import pallas as pl
from jax.experimental.pallas import tpu as pltpu


def encoder_kernel(x_ref, wa_ref, wb_ref, out_ref):
    # x_ref:  (1, K+1, hop) f32   hop-sized chunks of the mixture
    # wa_ref: (N, hop)      bf16  first-half conv taps  W[:, :hop]
    # wb_ref: (N, hop)      bf16  second-half conv taps W[:, hop:]
    # out_ref:(1, N, K)     f32   relu(conv) in PyTorch [N, K] layout
    K = out_ref.shape[2]

    x = x_ref[0]                                  # (K+1, hop) f32
    x1 = x[:K, :].astype(jnp.bfloat16)            # frame k, first hop samples
    x2 = x[1:K + 1, :].astype(jnp.bfloat16)       # frame k, second hop samples

    # Contract the hop axis of both operands -> (N, K): K lands on the lane axis,
    # so the output is written directly in [M, N, K] layout (no XLA transpose).
    dn = (((1,), (1,)), ((), ()))
    acc = jax.lax.dot_general(wa_ref[...], x1, dn,
                              preferred_element_type=jnp.float32)
    acc = acc + jax.lax.dot_general(wb_ref[...], x2, dn,
                                    preferred_element_type=jnp.float32)

    out_ref[0] = jnp.maximum(acc, 0.0).astype(out_ref.dtype)


def encoder_forward(mixture, weight, L):
    """mixture: [M, T] float32; weight: [N, 1, L] (nn.Conv1d(1, N, L) weight layout)."""
    M, T = mixture.shape
    N = weight.shape[0]
    assert L % 2 == 0, "Encoder uses stride = L//2; the hop-split trick needs even L"
    hop = L // 2
    K = (T - L) // hop + 1
    assert K >= 1, "T must be >= L"

    # Free (bitcast) reshape: x3[m, j, h] = mixture[m, j*hop + h].
    # Frame k of the conv is the concatenation of rows k and k+1 of x3.
    # (K+1)*hop <= T always holds, so the slice below never goes out of bounds;
    # when (T - L) % hop == 0 (the usual ConvTasNet case) it is the full array.
    x3 = mixture[:, :(K + 1) * hop].reshape(M, K + 1, hop)

    w = weight[:, 0, :]                              # (N, L)
    wa = w[:, :hop].astype(jnp.bfloat16)             # (N, hop)
    wb = w[:, hop:].astype(jnp.bfloat16)             # (N, hop)

    out = pl.pallas_call(
        encoder_kernel,
        out_shape=jax.ShapeDtypeStruct((M, N, K), jnp.float32),
        grid_spec=pltpu.PrefetchScalarGridSpec(
            num_scalar_prefetch=0,
            grid=(M,),
            in_specs=[
                pl.BlockSpec((1, K + 1, hop), lambda m: (m, 0, 0)),
                pl.BlockSpec((N, hop), lambda m: (0, 0)),   # resident weight block
                pl.BlockSpec((N, hop), lambda m: (0, 0)),   # resident weight block
            ],
            out_specs=pl.BlockSpec((1, N, K), lambda m: (m, 0, 0)),
        ),
        compiler_params=pltpu.CompilerParams(
            dimension_semantics=("parallel",),
        ),
    )(x3, wa, wb)
    return out


if __name__ == "__main__":
    # Small, consistent shapes: batch M=2, samples T=128, window L=16, filters N=64
    L, N = 16, 64
    M, T = 2, 128

    key = jax.random.PRNGKey(0)
    k_x, k_w = jax.random.split(key)
    mixture = jax.random.normal(k_x, (M, T), dtype=jnp.float32)
    # nn.Conv1d(1, N, L, bias=False) weight, shape [N, 1, L]
    weight = jax.random.normal(k_w, (N, 1, L), dtype=jnp.float32) * 0.1

    out = jax.block_until_ready(encoder_forward(mixture, weight, L))

    # Reference: plain-JAX strided-conv-as-frame-matmul in full f32.
    hop = L // 2
    K = (T - L) // hop + 1
    idx = (jnp.arange(K) * hop)[:, None] + jnp.arange(L)[None, :]
    frames = mixture[:, idx]                                   # [M, K, L]
    ref = jnp.maximum(
        jnp.einsum("mkl,nl->mnk", frames, weight[:, 0, :],
                   precision=jax.lax.Precision.HIGHEST),
        0.0,
    )

    assert out.shape == (M, N, K), out.shape
    max_err = float(jnp.max(jnp.abs(out - ref)))
    # Tolerance accounts for bf16 MXU operands (f32 accumulation).
    assert jnp.allclose(out, ref, atol=3e-2, rtol=3e-2), f"max abs err = {max_err}"
    print("KERNEL_OK")
</pallas_src>

<mosaic_0001>
module attributes {stable_mosaic.version = 11 : i64} {
  func.func @encoder_kernel(%arg0: i32, %arg1: memref<1x16x8xf32, #tpu.memory_space<vmem>>, %arg2: memref<64x8xbf16, #tpu.memory_space<vmem>>, %arg3: memref<64x8xbf16, #tpu.memory_space<vmem>>, %arg4: memref<1x64x15xf32, #tpu.memory_space<vmem>>) attributes {dimension_semantics = [#tpu.dimension_semantics<parallel>], iteration_bounds = array<i64: 2>, scalar_prefetch = 0 : i64, scratch_operands = 0 : i64, tpu.core_type = #tpu.core_type<tc>, window_params = [{transform_indices = @transform_0, window_bounds = array<i64: 1, 16, 8>}, {pipeline_mode = #tpu.pipeline_mode<synchronous>, transform_indices = @transform_1, window_bounds = array<i64: 64, 8>}, {pipeline_mode = #tpu.pipeline_mode<synchronous>, transform_indices = @transform_2, window_bounds = array<i64: 64, 8>}, {transform_indices = @transform_3, window_bounds = array<i64: 1, 64, 15>}]} {
    %c0 = arith.constant 0 : index
    %c0_0 = arith.constant 0 : index
    %c0_1 = arith.constant 0 : index
    %0 = vector.load %arg1[%c0, %c0_0, %c0_1] : memref<1x16x8xf32, #tpu.memory_space<vmem>>, vector<1x16x8xf32>
    %1 = vector.shape_cast %0 : vector<1x16x8xf32> to vector<16x8xf32>
    %2 = vector.extract_strided_slice %1 {offsets = [0, 0], sizes = [15, 8], strides = [1, 1]} : vector<16x8xf32> to vector<15x8xf32>
    %3 = arith.truncf %2 : vector<15x8xf32> to vector<15x8xbf16>
    %4 = vector.extract_strided_slice %1 {offsets = [1, 0], sizes = [15, 8], strides = [1, 1]} : vector<16x8xf32> to vector<15x8xf32>
    %5 = arith.truncf %4 : vector<15x8xf32> to vector<15x8xbf16>
    %c0_2 = arith.constant 0 : index
    %c0_3 = arith.constant 0 : index
    %6 = vector.load %arg2[%c0_2, %c0_3] : memref<64x8xbf16, #tpu.memory_space<vmem>>, vector<64x8xbf16>
    %cst = arith.constant dense<0.000000e+00> : vector<64x15xf32>
    %7 = tpu.matmul %6, %3, %cst {dimension_numbers = #tpu.dot_dimension_numbers<[1], [1], [0], [0], [0, 0, 1, 0], [], []>} : vector<64x8xbf16>, vector<15x8xbf16>, vector<64x15xf32> -> vector<64x15xf32>
    %c0_4 = arith.constant 0 : index
    %c0_5 = arith.constant 0 : index
    %8 = vector.load %arg3[%c0_4, %c0_5] : memref<64x8xbf16, #tpu.memory_space<vmem>>, vector<64x8xbf16>
    %cst_6 = arith.constant dense<0.000000e+00> : vector<64x15xf32>
    %9 = tpu.matmul %8, %5, %cst_6 {dimension_numbers = #tpu.dot_dimension_numbers<[1], [1], [0], [0], [0, 0, 1, 0], [], []>} : vector<64x8xbf16>, vector<15x8xbf16>, vector<64x15xf32> -> vector<64x15xf32>
    %10 = arith.addf %7, %9 : vector<64x15xf32>
    %cst_7 = arith.constant 0.000000e+00 : f32
    %11 = vector.broadcast %cst_7 : f32 to vector<64x15xf32>
    %12 = arith.maximumf %10, %11 : vector<64x15xf32>
    %c0_8 = arith.constant 0 : index
    %c0_9 = arith.constant 0 : index
    %c0_10 = arith.constant 0 : index
    %13 = vector.load %arg4[%c0_8, %c0_9, %c0_10] : memref<1x64x15xf32, #tpu.memory_space<vmem>>, vector<1x64x15xf32>
    %14 = vector.shape_cast %13 : vector<1x64x15xf32> to vector<64x15xf32>
    %15 = vector.shape_cast %12 : vector<64x15xf32> to vector<1x64x15xf32>
    tpu.vector_store %arg4[%c0_8, %c0_9, %c0_10], %15 {strides = array<i32>} : memref<1x64x15xf32, #tpu.memory_space<vmem>>, vector<1x64x15xf32>,
    return
  }
  func.func @transform_0(%arg0: i32) -> (i32, i32, i32) {
    %c0_i32 = arith.constant 0 : i32
    %c0_i32_0 = arith.constant 0 : i32
    %c0_i32_1 = arith.constant 0 : i32
    return %arg0, %c0_i32, %c0_i32_0 : i32, i32, i32
  }
  func.func @transform_1(%arg0: i32) -> (i32, i32) {
    %c0_i32 = arith.constant 0 : i32
    %c0_i32_0 = arith.constant 0 : i32
    %c0_i32_1 = arith.constant 0 : i32
    return %c0_i32, %c0_i32_0 : i32, i32
  }
  func.func @transform_2(%arg0: i32) -> (i32, i32) {
    %c0_i32 = arith.constant 0 : i32
    %c0_i32_0 = arith.constant 0 : i32
    %c0_i32_1 = arith.constant 0 : i32
    return %c0_i32, %c0_i32_0 : i32, i32
  }
  func.func @transform_3(%arg0: i32) -> (i32, i32, i32) {
    %c0_i32 = arith.constant 0 : i32
    %c0_i32_0 = arith.constant 0 : i32
    %c0_i32_1 = arith.constant 0 : i32
    return %arg0, %c0_i32, %c0_i32_0 : i32, i32, i32
  }
}

</mosaic_0001>

<llo_original>
// kernel: tpu_custom_call.1
$region0: #{tpu_custom_call.1}
  #allocation0 [shape = 'u32[]', space=smem, size = 0x4, offset = 0x4, fixed_abs, tag = 'smem constant byte address 0x4 - core index']
  #allocation1 [shape = 'u32[144,128]{1,0:T(1,128)}', space=vmem, size = 0x12000, scoped, tag = 'internal scratch']
  %s0 = inlined_call_operand.vmem [shape: f32[2,16,8], index: 0, kind: input, shape index: {}]
  %s1 = inlined_call_operand.vmem [shape: bf16[64,8], index: 1, kind: input, shape index: {}]
  %s2 = inlined_call_operand.vmem [shape: bf16[64,8], index: 2, kind: input, shape index: {}]
  %s3 = inlined_call_operand.vmem [shape: f32[2,64,15], index: 3, kind: output, shape index: {}]
  %s4 = sld [smem:[#allocation0]]
  $region45: #{tpu_custom_call.1} parent=0
    _
  %s6 = ssub.s32 1, %s4
  %s7 = scalar_select 0, %s6, %s4
  loop: start=0, step=1, limit=4
  $region2: #{tpu_custom_call.1} parent=0 // loop_pre_header
    _
  $region3: #{tpu_custom_call.1} parent=0 // loop_header
    %s9 = sphi 0, %s13
    %p10 = scmp.ge.s32.totalorder %s9, 4
    %s19 = sphi 0, %s21
    %s22 = sphi 0, %s19
    %s23 = sphi 0, %s22
    %s39 = sphi 0, %s23
    %s43 = sphi 0, %s43
    %s45 = sphi 0, %s43
    %s46 = sphi 0, %s45
    %s60 = sphi 0, %s46
    %s64 = sphi 0, %s64
    %s66 = sphi 0, %s64
    %s67 = sphi 0, %s66
    %s81 = sphi 0, %s67
    %s87 = sphi 0, %s89
    %s90 = sphi 0, %s87
    %s91 = sphi 0, %s90
    %s107 = sphi 0, %s91
  $region4: #{tpu_custom_call.1} parent=0 // loop_header_branch
    %12 = sbr.rel (%p10) target = $region8
  $region5: #{tpu_custom_call.1} parent=0 // loop_body
    %s14 = ssub.s32 %s9, 1
    %s15 = ssub.s32 %s9, 2
    %s16 = sadd.s32 %s9, 1
    %s17 = ssub.s32 %s9, %s16
    %p18 = scmp.eq.s32.totalorder %s17, 0
    %s20 = sadd.s32 %s19, 1
    %s21 = scalar_select %p18, %s19, %s20
    %p24 = pneg %p18
    %p25 = scmp.eq.s32.totalorder %s9, 1
    %p26 = por %p24, %p25
    %p27 = scmp.ne.s32.totalorder %s19, %s22
    %p28 = scmp.eq.s32.totalorder %s9, 0
    %p29 = por %p27, %p28
    %p30 = scmp.ne.s32.totalorder %s19, %s22
    %p31 = scmp.eq.s32.totalorder %s14, 1
    %p32 = por %p30, %p31
    %p33 = scmp.ne.s32.totalorder %s22, %s23
    %p34 = scmp.eq.s32.totalorder %s14, 0
    %p35 = por %p33, %p34
    %p36 = scmp.ne.s32.totalorder %s22, %s23
    %p37 = scmp.eq.s32.totalorder %s15, 1
    %p38 = por %p36, %p37
    %p40 = scmp.ne.s32.totalorder %s23, %s39
    %p41 = scmp.eq.s32.totalorder %s15, 0
    %p42 = por %p40, %p41
    %s44 = sadd.s32 %s43, 1
    %p47 = scmp.eq.s32.totalorder %s9, 1
    %p48 = scmp.ne.s32.totalorder %s43, %s45
    %p49 = scmp.eq.s32.totalorder %s9, 0
    %p50 = por %p48, %p49
    %p51 = scmp.ne.s32.totalorder %s43, %s45
    %p52 = scmp.eq.s32.totalorder %s14, 1
    %p53 = por %p51, %p52
    %p54 = scmp.ne.s32.totalorder %s45, %s46
    %p55 = scmp.eq.s32.totalorder %s14, 0
    %p56 = por %p54, %p55
    %p57 = scmp.ne.s32.totalorder %s45, %s46
    %p58 = scmp.eq.s32.totalorder %s15, 1
    %p59 = por %p57, %p58
    %p61 = scmp.ne.s32.totalorder %s46, %s60
    %p62 = scmp.eq.s32.totalorder %s15, 0
    %p63 = por %p61, %p62
    %s65 = sadd.s32 %s64, 1
    %p68 = scmp.eq.s32.totalorder %s9, 1
    %p69 = scmp.ne.s32.totalorder %s64, %s66
    %p70 = scmp.eq.s32.totalorder %s9, 0
    %p71 = por %p69, %p70
    %p72 = scmp.ne.s32.totalorder %s64, %s66
    %p73 = scmp.eq.s32.totalorder %s14, 1
    %p74 = por %p72, %p73
    %p75 = scmp.ne.s32.totalorder %s66, %s67
    %p76 = scmp.eq.s32.totalorder %s14, 0
    %p77 = por %p75, %p76
    %p78 = scmp.ne.s32.totalorder %s66, %s67
    %p79 = scmp.eq.s32.totalorder %s15, 1
    %p80 = por %p78, %p79
    %p82 = scmp.ne.s32.totalorder %s67, %s81
    %p83 = scmp.eq.s32.totalorder %s15, 0
    %p84 = por %p82, %p83
    %s85 = ssub.s32 %s9, %s16
    %p86 = scmp.eq.s32.totalorder %s85, 0
    %s88 = sadd.s32 %s87, 1
    %s89 = scalar_select %p86, %s87, %s88
    %p92 = pneg %p86
    %p93 = scmp.eq.s32.totalorder %s9, 1
    %p94 = por %p92, %p93
    %p95 = scmp.ne.s32.totalorder %s87, %s90
    %p96 = scmp.eq.s32.totalorder %s9, 0
    %p97 = por %p95, %p96
    %p98 = scmp.ne.s32.totalorder %s87, %s90
    %p99 = scmp.eq.s32.totalorder %s14, 1
    %p100 = por %p98, %p99
    %p101 = scmp.ne.s32.totalorder %s90, %s91
    %p102 = scmp.eq.s32.totalorder %s14, 0
    %p103 = por %p101, %p102
    %p104 = scmp.ne.s32.totalorder %s90, %s91
    %p105 = scmp.eq.s32.totalorder %s15, 1
    %p106 = por %p104, %p105
    %p108 = scmp.ne.s32.totalorder %s91, %s107
    %p109 = scmp.eq.s32.totalorder %s15, 0
    %p110 = por %p108, %p109
    %p111 = scmp.le.s32.totalorder 1, %s9
    %p112 = scmp.lt.s32.totalorder %s9, 3
    %p113 = pnand %p111, %p112
    %p114 = pneg %p113
    // Predicated region
    $region9: #{tpu_custom_call.1} parent=5 // pred_check
      _
    $region10: #{tpu_custom_call.1} parent=5 // pred_check_branch
      %116 = sbr.rel (%p113) target = $region12
    $region11: #{tpu_custom_call.1} parent=5 // pred_region
      %s117 = ssub.s32 %s9, 1
      // Predicated region
      $region13: #{tpu_custom_call.1} parent=11 // pred_check
        %p118 = pneg %p56
      $region14: #{tpu_custom_call.1} parent=11 // pred_check_branch
        %120 = sbr.rel (%p118) target = $region16
      $region15: #{tpu_custom_call.1} parent=11 // pred_region
        _
      $region16: #{tpu_custom_call.1} parent=11 // pred_fallthru
        _
      // Predicated region
      $region17: #{tpu_custom_call.1} parent=11 // pred_check
        %p121 = pneg %p77
      $region18: #{tpu_custom_call.1} parent=11 // pred_check_branch
        %123 = sbr.rel (%p121) target = $region20
      $region19: #{tpu_custom_call.1} parent=11 // pred_region
        _
      $region20: #{tpu_custom_call.1} parent=11 // pred_fallthru
        _
    $region12: #{tpu_custom_call.1} parent=5 // pred_fallthru
      _
    %p124 = scmp.lt.s32.totalorder %s9, 2
    // Predicated region
    $region21: #{tpu_custom_call.1} parent=5 // pred_check
      %p125 = pneg %p124
    $region22: #{tpu_custom_call.1} parent=5 // pred_check_branch
      %127 = sbr.rel (%p125) target = $region24
    $region23: #{tpu_custom_call.1} parent=5 // pred_region
      // Predicated region
      $region25: #{tpu_custom_call.1} parent=23 // pred_check
        %p128 = pneg %p29
      $region26: #{tpu_custom_call.1} parent=23 // pred_check_branch
        %130 = sbr.rel (%p128) target = $region28
      $region27: #{tpu_custom_call.1} parent=23 // pred_region
        %p131 = scmp.lt.s32.totalorder %s9, 1
        %s132 = scalar_select %p131, %s9, 1
        %s133 = smul.addr %s132, 2
        %s134 = smul.addr %s133, 8
        %s135 = scalar_lea.vmem %s0, %s134
      $region28: #{tpu_custom_call.1} parent=23 // pred_fallthru
        _
    $region24: #{tpu_custom_call.1} parent=5 // pred_fallthru
      _
    %p136 = scmp.le.s32.totalorder 1, %s9
    %p137 = scmp.lt.s32.totalorder %s9, 3
    %p138 = pnand %p136, %p137
    %p139 = pneg %p138
    // Predicated region
    $region29: #{tpu_custom_call.1} parent=5 // pred_check
      _
    $region30: #{tpu_custom_call.1} parent=5 // pred_check_branch
      %141 = sbr.rel (%p138) target = $region32
    $region31: #{tpu_custom_call.1} parent=5 // pred_region
      %s142 = ssub.s32 %s9, 1
      %p143 = scmp.lt.s32.totalorder %s14, 1
      %s144 = scalar_select %p143, %s14, 1
      %s145 = smul.addr %s144, 2
      %s146 = smul.addr %s145, 8
      %s147 = scalar_lea.vmem %s0, %s146
      %p148 = pneg %p35
      %p149 = pneg %p32
      %p150 = pneg %p56
      %p151 = pneg %p53
      %p152 = pneg %p77
      %p153 = pneg %p74
      %p154 = pneg %p103
      %p155 = pneg %p100
      %p156 = scmp.lt.s32.totalorder %s14, 1
      %s157 = scalar_select %p156, %s14, 1
      %s158 = smul.addr %s157, 8
      %s159 = smul.addr %s158, 8
      %s160 = scalar_lea.vmem %s3, %s159
      %p161 = scmp.lt.s32.totalorder %s14, 1
      %s162 = scalar_select %p161, %s14, 1
      %s163 = smul.addr %s162, 2
      %s164 = smul.addr %s163, 8
      %s165 = scalar_lea.vmem %s0, %s164
      %p166 = scmp.lt.s32.totalorder %s14, 1
      %s167 = scalar_select %p166, %s14, 1
      %s168 = smul.addr %s167, 8
      %s169 = smul.addr %s168, 8
      %s170 = scalar_lea.vmem %s3, %s169
      %v172 = vld [vmem:[%s165] sm:$0xff]
      %v173 = vld [vmem:[%s165 + $0x8] sm:$0xff]
      %v174 = vpack.c.bf16 %v173, %v172
      %v175 = vld [vmem:[%s1] sm:$0xf]
      %v176 = vld [vmem:[%s1 + $0x4] sm:$0xf]
      %v177 = vld [vmem:[%s1 + $0x8] sm:$0xf]
      %v178 = vld [vmem:[%s1 + $0xc] sm:$0xf]
      %v179 = vld [vmem:[%s1 + $0x10] sm:$0xf]
      %v180 = vld [vmem:[%s1 + $0x14] sm:$0xf]
      %v181 = vld [vmem:[%s1 + $0x18] sm:$0xf]
      %v182 = vld [vmem:[%s1 + $0x1c] sm:$0xf]
      %v183 = vld [vmem:[%s2] sm:$0xf]
      %v184 = vld [vmem:[%s2 + $0x4] sm:$0xf]
      %v185 = vld [vmem:[%s2 + $0x8] sm:$0xf]
      %v186 = vld [vmem:[%s2 + $0xc] sm:$0xf]
      %v187 = vld [vmem:[%s2 + $0x10] sm:$0xf]
      %v188 = vld [vmem:[%s2 + $0x14] sm:$0xf]
      %v189 = vld [vmem:[%s2 + $0x18] sm:$0xf]
      %v190 = vld [vmem:[%s2 + $0x1c] sm:$0xf]
      %v199 = vunpack.c.l.b16 %v183
      %v200 = vunpack.c.l.b16 %v184
      %v201 = vunpack.c.l.b16 %v185
      %v202 = vunpack.c.l.b16 %v186
      %v203 = vunpack.c.l.b16 %v187
      %v204 = vunpack.c.l.b16 %v188
      %v205 = vunpack.c.l.b16 %v189
      %v206 = vunpack.c.l.b16 %v190
      %v207 = vpack.c.b16 %v200, %v199
      %v208 = vpack.c.b16 %v202, %v201
      %v209 = vpack.c.b16 %v204, %v203
      %v210 = vpack.c.b16 %v206, %v205
      %v212 = vshrl.u32 %v174, 16
      %v214 = vshll.u32 %v174, 16
      %v216 = vrot.slane %v214, 1
      %v217 = vor.u32 %v212, %v216
      %vm218 = vcmask 64512
      %v220 = vsel %vm218, %v207, 0
      %v223 = vsel %vm218, %v208, 0
      %v226 = vsel %vm218, %v209, 0
      %v229 = vsel %vm218, %v210, 0
      %v232 = vsel %vm218, %v217, 0
      %234 = vmatprep.subr.bf16.mxu0 0
      %235 = vmatpush1.bf16.xpose.msra.mxu0 %v232
      %236 = vmatprep.subr.bf16.mxu0 0
      %237 = vmatpush1.bf16.xpose.msra.mxu0 0
      %238 = vmatprep.subr.bf16.mxu0 0
      %239 = vmatpush1.bf16.xpose.msra.mxu0 0
      %240 = vmatprep.subr.bf16.mxu0 0
      %241 = vmatpush1.bf16.xpose.msra.mxu0 0
      %242 = vmatprep.subr.bf16.mxu0 0
      %243 = vmatpush1.bf16.xpose.msra.mxu0 0
      %244 = vmatprep.subr.bf16.mxu0 0
      %245 = vmatpush1.bf16.xpose.msra.mxu0 0
      %246 = vmatprep.subr.bf16.mxu0 0
      %247 = vmatpush1.bf16.xpose.msra.mxu0 0
      %248 = vmatprep.subr.bf16.mxu0 0
      %249 = vmatpush1.bf16.xpose.msra.mxu0 0
      %250 = vmatprep.subr.bf16.mxu0 0
      %251 = vmatpush1.bf16.xpose.msra.mxu0 0
      %252 = vmatprep.subr.bf16.mxu0 0
      %253 = vmatpush1.bf16.xpose.msra.mxu0 0
      %254 = vmatprep.subr.bf16.mxu0 0
      %255 = vmatpush1.bf16.xpose.msra.mxu0 0
      %256 = vmatprep.subr.bf16.mxu0 0
      %257 = vmatpush1.bf16.xpose.msra.mxu0 0
      %258 = vmatprep.subr.bf16.mxu0 0
      %259 = vmatpush1.bf16.xpose.msra.mxu0 0
      %260 = vmatprep.subr.bf16.mxu0 0
      %261 = vmatpush1.bf16.xpose.msra.mxu0 0
      %262 = vmatprep.subr.bf16.mxu0 0
      %263 = vmatpush1.bf16.xpose.msra.mxu0 0
      %264 = vmatprep.subr.bf16.mxu0 0
      %265 = vmatpush1.bf16.xpose.msra.mxu0 0
      %266 = vmatprep.mubr.bf16.mxu0 0
      %267 = vmatmul.mubr.bf16.gmra.mrb[0].mxu0 %v220
      %v268 = vpop.f32.mrb[0].mxu0
      %v269 = vadd.f32 0.0, %v268
      %v270 = vpop.f32.mrb[0].mxu0
      %v271 = vpop.f32.mrb[0].mxu0
      %v272 = vadd.f32 0.0, %v271
      %v273 = vpop.f32.mrb[0].mxu0
      %274 = vmatprep.mubr.bf16.mxu0 0
      %275 = vmatmul.mubr.bf16.gmra.mrb[0].mxu0 %v223
      %v276 = vpop.f32.mrb[0].mxu0
      %v277 = vadd.f32 0.0, %v276
      %v278 = vpop.f32.mrb[0].mxu0
      %v279 = vpop.f32.mrb[0].mxu0
      %v280 = vadd.f32 0.0, %v279
      %v281 = vpop.f32.mrb[0].mxu0
      %282 = vmatprep.mubr.bf16.mxu0 0
      %283 = vmatmul.mubr.bf16.gmra.mrb[0].mxu0 %v226
      %v284 = vpop.f32.mrb[0].mxu0
      %v285 = vadd.f32 0.0, %v284
      %v286 = vpop.f32.mrb[0].mxu0
      %v287 = vpop.f32.mrb[0].mxu0
      %v288 = vadd.f32 0.0, %v287
      %v289 = vpop.f32.mrb[0].mxu0
      %290 = vmatprep.mubr.bf16.mxu0 0
      %291 = vmatmul.mubr.bf16.gmra.mrb[0].mxu0 %v229
      %v292 = vpop.f32.mrb[0].mxu0
      %v293 = vadd.f32 0.0, %v292
      %v294 = vpop.f32.mrb[0].mxu0
      %v295 = vpop.f32.mrb[0].mxu0
      %v296 = vadd.f32 0.0, %v295
      %v297 = vpop.f32.mrb[0].mxu0
      %298 = vdwg.mxu0
      %v307 = vunpack.c.l.b16 %v175
      %v308 = vunpack.c.l.b16 %v176
      %v309 = vunpack.c.l.b16 %v177
      %v310 = vunpack.c.l.b16 %v178
      %v311 = vunpack.c.l.b16 %v179
      %v312 = vunpack.c.l.b16 %v180
      %v313 = vunpack.c.l.b16 %v181
      %v314 = vunpack.c.l.b16 %v182
      %v315 = vpack.c.b16 %v308, %v307
      %v316 = vpack.c.b16 %v310, %v309
      %v317 = vpack.c.b16 %v312, %v311
      %v318 = vpack.c.b16 %v314, %v313
      %v320 = vsel %vm218, %v315, 0
      %v323 = vsel %vm218, %v316, 0
      %v326 = vsel %vm218, %v317, 0
      %v329 = vsel %vm218, %v318, 0
      %v331 = vsel %vm218, %v174, 0
      %333 = vmatprep.subr.bf16.mxu0 0
      %334 = vmatpush1.bf16.xpose.msra.mxu0 %v331
      %335 = vmatprep.subr.bf16.mxu0 0
      %336 = vmatpush1.bf16.xpose.msra.mxu0 0
      %337 = vmatprep.subr.bf16.mxu0 0
      %338 = vmatpush1.bf16.xpose.msra.mxu0 0
      %339 = vmatprep.subr.bf16.mxu0 0
      %340 = vmatpush1.bf16.xpose.msra.mxu0 0
      %341 = vmatprep.subr.bf16.mxu0 0
      %342 = vmatpush1.bf16.xpose.msra.mxu0 0
      %343 = vmatprep.subr.bf16.mxu0 0
      %344 = vmatpush1.bf16.xpose.msra.mxu0 0
      %345 = vmatprep.subr.bf16.mxu0 0
      %346 = vmatpush1.bf16.xpose.msra.mxu0 0
      %347 = vmatprep.subr.bf16.mxu0 0
      %348 = vmatpush1.bf16.xpose.msra.mxu0 0
      %349 = vmatprep.subr.bf16.mxu0 0
      %350 = vmatpush1.bf16.xpose.msra.mxu0 0
      %351 = vmatprep.subr.bf16.mxu0 0
      %352 = vmatpush1.bf16.xpose.msra.mxu0 0
      %353 = vmatprep.subr.bf16.mxu0 0
      %354 = vmatpush1.bf16.xpose.msra.mxu0 0
      %355 = vmatprep.subr.bf16.mxu0 0
      %356 = vmatpush1.bf16.xpose.msra.mxu0 0
      %357 = vmatprep.subr.bf16.mxu0 0
      %358 = vmatpush1.bf16.xpose.msra.mxu0 0
      %359 = vmatprep.subr.bf16.mxu0 0
      %360 = vmatpush1.bf16.xpose.msra.mxu0 0
      %361 = vmatprep.subr.bf16.mxu0 0
      %362 = vmatpush1.bf16.xpose.msra.mxu0 0
      %363 = vmatprep.subr.bf16.mxu0 0
      %364 = vmatpush1.bf16.xpose.msra.mxu0 0
      %365 = vmatprep.mubr.bf16.mxu0 0
      %366 = vmatmul.mubr.bf16.gmra.mrb[0].mxu0 %v320
      %v367 = vpop.f32.mrb[0].mxu0
      %v368 = vadd.f32 %v269, %v367
      %v369 = vpop.f32.mrb[0].mxu0
      %v370 = vpop.f32.mrb[0].mxu0
      %v371 = vadd.f32 %v272, %v370
      %v372 = vpop.f32.mrb[0].mxu0
      %373 = vmatprep.mubr.bf16.mxu0 0
      %374 = vmatmul.mubr.bf16.gmra.mrb[0].mxu0 %v323
      %v375 = vpop.f32.mrb[0].mxu0
      %v376 = vadd.f32 %v277, %v375
      %v377 = vpop.f32.mrb[0].mxu0
      %v378 = vpop.f32.mrb[0].mxu0
      %v379 = vadd.f32 %v280, %v378
      %v380 = vpop.f32.mrb[0].mxu0
      %381 = vmatprep.mubr.bf16.mxu0 0
      %382 = vmatmul.mubr.bf16.gmra.mrb[0].mxu0 %v326
      %v383 = vpop.f32.mrb[0].mxu0
      %v384 = vadd.f32 %v285, %v383
      %v385 = vpop.f32.mrb[0].mxu0
      %v386 = vpop.f32.mrb[0].mxu0
      %v387 = vadd.f32 %v288, %v386
      %v388 = vpop.f32.mrb[0].mxu0
      %389 = vmatprep.mubr.bf16.mxu0 0
      %390 = vmatmul.mubr.bf16.gmra.mrb[0].mxu0 %v329
      %v391 = vpop.f32.mrb[0].mxu0
      %v392 = vadd.f32 %v293, %v391
      %v393 = vpop.f32.mrb[0].mxu0
      %v394 = vpop.f32.mrb[0].mxu0
      %v395 = vadd.f32 %v296, %v394
      %v396 = vpop.f32.mrb[0].mxu0
      %397 = vdwg.mxu0
      %v398 = vmax.f32 %v368, 0.0
      %v399 = vmax.f32 %v371, 0.0
      %v400 = vmax.f32 %v376, 0.0
      %v401 = vmax.f32 %v379, 0.0
      %v402 = vmax.f32 %v384, 0.0
      %v403 = vmax.f32 %v387, 0.0
      %v404 = vmax.f32 %v392, 0.0
      %v405 = vmax.f32 %v395, 0.0
      %vm406 = vcmask 121856
      %407 = vst.msk [vmem:[%s170] sm:$0xff] %vm406, %v398
      %408 = vst.msk [vmem:[%s170 + $0x8] sm:$0xff] %vm406, %v399
      %409 = vst.msk [vmem:[%s170 + $0x10] sm:$0xff] %vm406, %v400
      %410 = vst.msk [vmem:[%s170 + $0x18] sm:$0xff] %vm406, %v401
      %411 = vst.msk [vmem:[%s170 + $0x20] sm:$0xff] %vm406, %v402
      %412 = vst.msk [vmem:[%s170 + $0x28] sm:$0xff] %vm406, %v403
      %413 = vst.msk [vmem:[%s170 + $0x30] sm:$0xff] %vm406, %v404
      %414 = vst.msk [vmem:[%s170 + $0x38] sm:$0xff] %vm406, %v405
      %p415 = scmp.lt.s32.totalorder %s14, 1
      %s416 = scalar_select %p415, %s14, 1
      %s417 = smul.addr %s416, 8
      %s418 = smul.addr %s417, 8
      %s419 = scalar_lea.vmem %s3, %s418
      // Predicated region
      $region33: #{tpu_custom_call.1} parent=31 // pred_check
        %p420 = pneg %p100
      $region34: #{tpu_custom_call.1} parent=31 // pred_check_branch
        %422 = sbr.rel (%p420) target = $region36
      $region35: #{tpu_custom_call.1} parent=31 // pred_region
        _
      $region36: #{tpu_custom_call.1} parent=31 // pred_fallthru
        _
    $region32: #{tpu_custom_call.1} parent=5 // pred_fallthru
      _
    %p423 = scmp.le.s32.totalorder 2, %s9
    // Predicated region
    $region37: #{tpu_custom_call.1} parent=5 // pred_check
      %p424 = pneg %p423
    $region38: #{tpu_custom_call.1} parent=5 // pred_check_branch
      %426 = sbr.rel (%p424) target = $region40
    $region39: #{tpu_custom_call.1} parent=5 // pred_region
      %s427 = ssub.s32 %s9, 2
      // Predicated region
      $region41: #{tpu_custom_call.1} parent=39 // pred_check
        %p428 = pneg %p106
      $region42: #{tpu_custom_call.1} parent=39 // pred_check_branch
        %430 = sbr.rel (%p428) target = $region44
      $region43: #{tpu_custom_call.1} parent=39 // pred_region
        %p431 = scmp.lt.s32.totalorder %s15, 1
        %s432 = scalar_select %p431, %s15, 1
        %s433 = smul.addr %s432, 8
        %s434 = smul.addr %s433, 8
        %s435 = scalar_lea.vmem %s3, %s434
      $region44: #{tpu_custom_call.1} parent=39 // pred_fallthru
        _
    $region40: #{tpu_custom_call.1} parent=5 // pred_fallthru
      _
  $region6: #{tpu_custom_call.1} parent=0 // loop_footer
    %s13 = sadd.s32 1, %s9
  $region7: #{tpu_custom_call.1} parent=0 // loop_footer_branch
    %8 = sbr.rel target = $region3
  $region8: #{tpu_custom_call.1} parent=0 // loop_exit
    _

</llo_original>
